<compile_context>
chip_gen: v6e
topology: v6e:2x2x1
jax: 0.10.0
libtpu: 0.0.40
codegen_flags: <defaults>
</compile_context>

<pallas_src>
import functools

import jax
import jax.numpy as jnp
from jax.experimental import pallas as pl
from jax.experimental.pallas import tpu as pltpu


def _soft_dice_partial_kernel(x_ref, y_ref, numer_ref, denom_ref, *,
                              block_rows, lanes, p, needs_mask,
                              valid_rows_last):
    # Cast to f32 in-register (amp custom_fwd cast_inputs semantics).
    x = x_ref[...].astype(jnp.float32)
    y = y_ref[...].astype(jnp.float32)

    probs = jax.nn.sigmoid(x)
    prod = probs * y
    if p == 1:
        pden = probs + y
    else:
        pden = probs ** p + y ** p

    def reduce8(v):
        # (block_rows, lanes) -> (8, lanes): sum groups of 8 sublanes.
        # Pure VPU adds; the reshape does not cross (8,128) tile boundaries.
        return jnp.sum(v.reshape(block_rows // 8, 8, lanes), axis=0)

    # Unmasked partials on every block (hot path).
    numer_ref[0] = reduce8(prod)
    denom_ref[0] = reduce8(pden)

    if needs_mask:
        # Only the last grid block may contain out-of-bounds / padded rows;
        # recompute and overwrite its partials with a row-validity mask.
        # valid_rows_last is a static Python int (< block_rows) -> no risk of
        # int32 overflow in the comparison.
        @pl.when(pl.program_id(0) == pl.num_programs(0) - 1)
        def _():
            row = jax.lax.broadcasted_iota(jnp.int32, (block_rows, lanes), 0)
            valid = row < valid_rows_last
            numer_ref[0] = reduce8(jnp.where(valid, prod, 0.0))
            denom_ref[0] = reduce8(jnp.where(valid, pden, 0.0))


def _round_up(v, m):
    return -(-v // m) * m


def soft_dice_loss_v3(logits: jax.Array, labels: jax.Array,
                      p=1, smooth=1.0) -> jax.Array:
    """SoftDiceLossV3 forward. Returns loss of shape (1,), float32."""
    assert logits.shape == labels.shape, "logits/labels must have same shape"

    x = logits.reshape(-1)   # contiguous reshape; no dtype cast here
    y = labels.reshape(-1)
    n = x.shape[0]

    # Widest lane count in (1024, 512, 256, 128) that divides n (zero-copy
    # reshape); otherwise 1024 and the remainder is handled in the wrapper.
    lanes = None
    for cand in (1024, 512, 256, 128):
        if n % cand == 0:
            lanes = cand
            break
    if lanes is None:
        lanes = 1024 if n >= 1024 else 128

    rows = n // lanes
    n_main = rows * lanes
    rem = n - n_main                       # 0 <= rem < lanes

    # Remainder (< lanes elements): tiny plain-jnp computation, avoids padding
    # and re-copying the whole tensor when n is not 128-aligned.
    tail_numer = jnp.float32(0.0)
    tail_denom = jnp.float32(0.0)
    if rem > 0:
        xt = jax.lax.slice(x, (n_main,), (n,)).astype(jnp.float32)
        yt = jax.lax.slice(y, (n_main,), (n,)).astype(jnp.float32)
        pt = jax.nn.sigmoid(xt)
        tail_numer = jnp.sum(pt * yt)
        tail_denom = jnp.sum((pt + yt) if p == 1 else (pt ** p + yt ** p))

    if rows == 0:
        # Degenerate tiny input (< 128 elements): everything was the tail.
        numer, denom = tail_numer, tail_denom
    else:
        # Lane-aligned prefix (a view when rem == 0).
        if rem == 0:
            x_main, y_main = x, y
        else:
            x_main = jax.lax.slice(x, (0,), (n_main,))
            y_main = jax.lax.slice(y, (0,), (n_main,))
        x2 = x_main.reshape(rows, lanes)
        y2 = y_main.reshape(rows, lanes)

        # Byte-based block sizing: ~8 MiB per input per buffer, rounded to a
        # multiple of 32 sublanes (friendly to bf16/int8 sublane packing).
        itemsize = max(jnp.dtype(logits.dtype).itemsize,
                       jnp.dtype(labels.dtype).itemsize)
        block_bytes = 8 * 1024 * 1024
        max_rows = max(32, (block_bytes // (lanes * itemsize)) // 32 * 32)
        # Keep >= 2 grid blocks when there is enough work (v7x megacore).
        block_rows = max(32, min(max_rows, _round_up(pl.cdiv(rows, 2), 32)))

        # Tiny inputs (rows < 32): pad up to one block (negligible copy); the
        # padded rows are excluded by the last-block mask below.
        if rows < block_rows:
            x2 = jnp.pad(x2, ((0, block_rows - rows), (0, 0)))
            y2 = jnp.pad(y2, ((0, block_rows - rows), (0, 0)))

        num_blocks = pl.cdiv(rows, block_rows)
        needs_mask = (rows != num_blocks * block_rows)
        valid_rows_last = rows - (num_blocks - 1) * block_rows

        kernel = functools.partial(
            _soft_dice_partial_kernel,
            block_rows=block_rows, lanes=lanes, p=p,
            needs_mask=needs_mask, valid_rows_last=valid_rows_last)

        numer_p, denom_p = pl.pallas_call(
            kernel,
            out_shape=(
                jax.ShapeDtypeStruct((num_blocks, 8, lanes), jnp.float32),
                jax.ShapeDtypeStruct((num_blocks, 8, lanes), jnp.float32)),
            grid_spec=pltpu.PrefetchScalarGridSpec(
                num_scalar_prefetch=0,
                grid=(num_blocks,),
                in_specs=[pl.BlockSpec((block_rows, lanes), lambda i: (i, 0)),
                          pl.BlockSpec((block_rows, lanes), lambda i: (i, 0))],
                out_specs=[pl.BlockSpec((1, 8, lanes), lambda i: (i, 0, 0)),
                           pl.BlockSpec((1, 8, lanes), lambda i: (i, 0, 0))],
            ),
            compiler_params=pltpu.CompilerParams(
                dimension_semantics=("parallel",),
                vmem_limit_bytes=48 * 1024 * 1024),
        )(x2, y2)

        # Tiny final reduction (negligible vs. the HBM-bound scan).
        numer = jnp.sum(numer_p) + tail_numer
        denom = jnp.sum(denom_p) + tail_denom

    loss = 1.0 - (2.0 * numer + smooth) / (denom + smooth)
    return loss.reshape(1).astype(jnp.float32)


def _soft_dice_ref(logits, labels, p=1, smooth=1.0):
    lg = logits.reshape(1, -1).astype(jnp.float32)
    lb = labels.reshape(1, -1).astype(jnp.float32)
    probs = jax.nn.sigmoid(lg)
    numer = 2.0 * jnp.sum(probs * lb, axis=1) + smooth
    denom = jnp.sum(probs ** p + lb ** p, axis=1) + smooth
    return 1.0 - numer / denom


if __name__ == "__main__":
    key = jax.random.PRNGKey(0)
    k1, k2, k3, k4, k5, k6 = jax.random.split(key, 6)

    # Small (N, C, H, W) shape consistent with the module.
    logits = jax.random.normal(k1, (2, 4, 16, 16), dtype=jnp.float32) * 2.0
    labels = jax.random.bernoulli(k2, 0.3, (2, 4, 16, 16)).astype(jnp.float32)
    loss = jax.block_until_ready(soft_dice_loss_v3(logits, labels, p=1, smooth=1.0))
    ref = _soft_dice_ref(logits, labels, p=1, smooth=1.0)
    assert loss.shape == (1,)
    assert loss.dtype == jnp.float32
    assert jnp.allclose(loss, ref, atol=1e-5, rtol=1e-5), (loss, ref)

    # Ragged size (n % 128 != 0): exercises wrapper tail + last-block row mask.
    logits2 = jax.random.normal(k3, (3, 5, 17, 13), dtype=jnp.float32)
    labels2 = jax.random.bernoulli(k4, 0.5, (3, 5, 17, 13)).astype(jnp.float32)
    loss2 = jax.block_until_ready(soft_dice_loss_v3(logits2, labels2))
    ref2 = _soft_dice_ref(logits2, labels2)
    assert jnp.allclose(loss2, ref2, atol=1e-5, rtol=1e-5), (loss2, ref2)

    # Multi-block grid with a partial last block (rows=40, block_rows=32), p=2.
    logits3 = jax.random.normal(k5, (4, 10, 32, 32), dtype=jnp.float32)
    labels3 = jax.random.bernoulli(k6, 0.4, (4, 10, 32, 32)).astype(jnp.float32)
    loss3 = jax.block_until_ready(soft_dice_loss_v3(logits3, labels3, p=2))
    ref3 = _soft_dice_ref(logits3, labels3, p=2)
    assert jnp.allclose(loss3, ref3, atol=1e-5, rtol=1e-5), (loss3, ref3)

    print("KERNEL_OK")
</pallas_src>

<mosaic_0001>
module attributes {stable_mosaic.version = 11 : i64} {
  func.func @_soft_dice_partial_kernel(%arg0: i32, %arg1: memref<32x1024xf32, #tpu.memory_space<vmem>>, %arg2: memref<32x1024xf32, #tpu.memory_space<vmem>>, %arg3: memref<1x8x1024xf32, #tpu.memory_space<vmem>>, %arg4: memref<1x8x1024xf32, #tpu.memory_space<vmem>>) attributes {dimension_semantics = [#tpu.dimension_semantics<parallel>], iteration_bounds = array<i64: 1>, scalar_prefetch = 0 : i64, scratch_operands = 0 : i64, tpu.core_type = #tpu.core_type<tc>, window_params = [{transform_indices = @transform_0, window_bounds = array<i64: 32, 1024>}, {transform_indices = @transform_1, window_bounds = array<i64: 32, 1024>}, {transform_indices = @transform_2, window_bounds = array<i64: 1, 8, 1024>}, {transform_indices = @transform_3, window_bounds = array<i64: 1, 8, 1024>}]} {
    %c0 = arith.constant 0 : index
    %c0_0 = arith.constant 0 : index
    %0 = vector.load %arg1[%c0, %c0_0] : memref<32x1024xf32, #tpu.memory_space<vmem>>, vector<32x1024xf32>
    %c0_1 = arith.constant 0 : index
    %c0_2 = arith.constant 0 : index
    %1 = vector.load %arg2[%c0_1, %c0_2] : memref<32x1024xf32, #tpu.memory_space<vmem>>, vector<32x1024xf32>
    %2 = arith.negf %0 : vector<32x1024xf32>
    %3 = math.exp %2 : vector<32x1024xf32>
    %cst = arith.constant 1.000000e+00 : f32
    %4 = vector.broadcast %cst : f32 to vector<32x1024xf32>
    %5 = arith.addf %4, %3 : vector<32x1024xf32>
    %6 = arith.divf %4, %5 : vector<32x1024xf32>
    %7 = arith.mulf %6, %1 : vector<32x1024xf32>
    %8 = arith.addf %6, %1 : vector<32x1024xf32>
    %9 = vector.shape_cast %7 : vector<32x1024xf32> to vector<4x8x1024xf32>
    %cst_3 = arith.constant dense<0.000000e+00> : vector<8x1024xf32>
    %10 = vector.multi_reduction <add>, %9, %cst_3 [0] : vector<4x8x1024xf32> to vector<8x1024xf32>
    %c0_4 = arith.constant 0 : index
    %c0_5 = arith.constant 0 : index
    %c0_6 = arith.constant 0 : index
    %11 = vector.load %arg3[%c0_4, %c0_5, %c0_6] : memref<1x8x1024xf32, #tpu.memory_space<vmem>>, vector<1x8x1024xf32>
    %12 = vector.shape_cast %11 : vector<1x8x1024xf32> to vector<8x1024xf32>
    %13 = vector.shape_cast %10 : vector<8x1024xf32> to vector<1x8x1024xf32>
    tpu.vector_store %arg3[%c0_4, %c0_5, %c0_6], %13 {strides = array<i32>} : memref<1x8x1024xf32, #tpu.memory_space<vmem>>, vector<1x8x1024xf32>,
    %14 = vector.shape_cast %8 : vector<32x1024xf32> to vector<4x8x1024xf32>
    %cst_7 = arith.constant dense<0.000000e+00> : vector<8x1024xf32>
    %15 = vector.multi_reduction <add>, %14, %cst_7 [0] : vector<4x8x1024xf32> to vector<8x1024xf32>
    %c0_8 = arith.constant 0 : index
    %c0_9 = arith.constant 0 : index
    %c0_10 = arith.constant 0 : index
    %16 = vector.load %arg4[%c0_8, %c0_9, %c0_10] : memref<1x8x1024xf32, #tpu.memory_space<vmem>>, vector<1x8x1024xf32>
    %17 = vector.shape_cast %16 : vector<1x8x1024xf32> to vector<8x1024xf32>
    %18 = vector.shape_cast %15 : vector<8x1024xf32> to vector<1x8x1024xf32>
    tpu.vector_store %arg4[%c0_8, %c0_9, %c0_10], %18 {strides = array<i32>} : memref<1x8x1024xf32, #tpu.memory_space<vmem>>, vector<1x8x1024xf32>,
    %c0_i32 = arith.constant 0 : i32
    %19 = arith.cmpi eq, %arg0, %c0_i32 : i32
    %20 = arith.extui %19 : i1 to i32
    %c0_i32_11 = arith.constant 0 : i32
    %21 = arith.cmpi ne, %20, %c0_i32_11 : i32
    scf.if %21 {
      %22 = tpu.iota {dimensions = array<i32: 0>} : vector<32x1024xi32>
      %c2_i32 = arith.constant 2 : i32
      %23 = vector.broadcast %c2_i32 : i32 to vector<32x1024xi32>
      %24 = arith.cmpi slt, %22, %23 : vector<32x1024xi32>
      %cst_12 = arith.constant 0.000000e+00 : f32
      %25 = vector.broadcast %cst_12 : f32 to vector<32x1024xf32>
      %26 = arith.select %24, %7, %25 : vector<32x1024xi1>, vector<32x1024xf32>
      %27 = vector.shape_cast %26 : vector<32x1024xf32> to vector<4x8x1024xf32>
      %cst_13 = arith.constant dense<0.000000e+00> : vector<8x1024xf32>
      %28 = vector.multi_reduction <add>, %27, %cst_13 [0] : vector<4x8x1024xf32> to vector<8x1024xf32>
      %c0_14 = arith.constant 0 : index
      %c0_15 = arith.constant 0 : index
      %c0_16 = arith.constant 0 : index
      %29 = vector.load %arg3[%c0_14, %c0_15, %c0_16] : memref<1x8x1024xf32, #tpu.memory_space<vmem>>, vector<1x8x1024xf32>
      %30 = vector.shape_cast %29 : vector<1x8x1024xf32> to vector<8x1024xf32>
      %31 = vector.shape_cast %28 : vector<8x1024xf32> to vector<1x8x1024xf32>
      tpu.vector_store %arg3[%c0_14, %c0_15, %c0_16], %31 {strides = array<i32>} : memref<1x8x1024xf32, #tpu.memory_space<vmem>>, vector<1x8x1024xf32>,
      %cst_17 = arith.constant 0.000000e+00 : f32
      %32 = vector.broadcast %cst_17 : f32 to vector<32x1024xf32>
      %33 = arith.select %24, %8, %32 : vector<32x1024xi1>, vector<32x1024xf32>
      %34 = vector.shape_cast %33 : vector<32x1024xf32> to vector<4x8x1024xf32>
      %cst_18 = arith.constant dense<0.000000e+00> : vector<8x1024xf32>
      %35 = vector.multi_reduction <add>, %34, %cst_18 [0] : vector<4x8x1024xf32> to vector<8x1024xf32>
      %c0_19 = arith.constant 0 : index
      %c0_20 = arith.constant 0 : index
      %c0_21 = arith.constant 0 : index
      %36 = vector.load %arg4[%c0_19, %c0_20, %c0_21] : memref<1x8x1024xf32, #tpu.memory_space<vmem>>, vector<1x8x1024xf32>
      %37 = vector.shape_cast %36 : vector<1x8x1024xf32> to vector<8x1024xf32>
      %38 = vector.shape_cast %35 : vector<8x1024xf32> to vector<1x8x1024xf32>
      tpu.vector_store %arg4[%c0_19, %c0_20, %c0_21], %38 {strides = array<i32>} : memref<1x8x1024xf32, #tpu.memory_space<vmem>>, vector<1x8x1024xf32>,
    } else {
    }
    return
  }
  func.func @transform_0(%arg0: i32) -> (i32, i32) {
    %c0_i32 = arith.constant 0 : i32
    %c0_i32_0 = arith.constant 0 : i32
    return %arg0, %c0_i32 : i32, i32
  }
  func.func @transform_1(%arg0: i32) -> (i32, i32) {
    %c0_i32 = arith.constant 0 : i32
    %c0_i32_0 = arith.constant 0 : i32
    return %arg0, %c0_i32 : i32, i32
  }
  func.func @transform_2(%arg0: i32) -> (i32, i32, i32) {
    %c0_i32 = arith.constant 0 : i32
    %c0_i32_0 = arith.constant 0 : i32
    %c0_i32_1 = arith.constant 0 : i32
    return %arg0, %c0_i32, %c0_i32_0 : i32, i32, i32
  }
  func.func @transform_3(%arg0: i32) -> (i32, i32, i32) {
    %c0_i32 = arith.constant 0 : i32
    %c0_i32_0 = arith.constant 0 : i32
    %c0_i32_1 = arith.constant 0 : i32
    return %arg0, %c0_i32, %c0_i32_0 : i32, i32, i32
  }
}

</mosaic_0001>

<llo_original>
// kernel: tpu_custom_call.1
$region0: #{tpu_custom_call.1}
  #allocation0 [shape = 'u32[]', space=smem, size = 0x4, offset = 0x4, fixed_abs, tag = 'smem constant byte address 0x4 - core index']
  #allocation1 [shape = 'u32[144,128]{1,0:T(1,128)}', space=vmem, size = 0x12000, scoped, tag = 'internal scratch']
  %s0 = inlined_call_operand.hbm [shape: f32[32,1024], index: 0, kind: input, shape index: {}]
  %s1 = inlined_call_operand.hbm [shape: f32[32,1024], index: 1, kind: input, shape index: {}]
  %s2 = inlined_call_operand.hbm [shape: f32[1,8,1024], index: 2, kind: output, shape index: {0}]
  %s3 = inlined_call_operand.hbm [shape: f32[1,8,1024], index: 3, kind: output, shape index: {1}]
  %4 = xla_tuple %s2, %s3
  %s5 = sld [smem:[#allocation0]]
  $region38: #{tpu_custom_call.1} parent=0
    _
  %s7 = ssub.s32 1, %s5
  %s8 = scalar_select 0, %s7, %s5
  $region1: #{tpu_custom_call.1} parent=0
    #allocation2 [shape = 'u8[131072]{0}', space=vmem, size = 0x20000, scoped, tag = 'input window, operand 0, single buffered']
    #allocation3 [shape = 's32[1]{0}', space=sflag, size = 0x4, scoped, tag = 'scoped memory for tpu_custom_call.1']
    #allocation4 [shape = 's32[1]{0}', space=sflag, size = 0x4, scoped, tag = 'scoped memory for tpu_custom_call.1']
    #allocation5 [shape = 'u8[131072]{0}', space=vmem, size = 0x20000, scoped, tag = 'input window, operand 1, single buffered']
    #allocation6 [shape = 's32[1]{0}', space=sflag, size = 0x4, scoped, tag = 'scoped memory for tpu_custom_call.1']
    #allocation7 [shape = 'u8[32768]{0}', space=vmem, size = 0x8000, scoped, tag = 'output window, operand 0, single buffered']
    #allocation8 [shape = 'u8[32768]{0}', space=vmem, size = 0x8000, scoped, tag = 'output window, operand 1, single buffered']
    #allocation9 [shape = 's32[1]{0}', space=sflag, size = 0x4, scoped, tag = 'scoped memory for tpu_custom_call.1']
    %9 = vsyncpa [#allocation3], 0
    %10 = vsyncpa [#allocation6], 0
    %11 = vsyncpa [#allocation4], 0
    %12 = vsyncpa [#allocation9], 0
    // Predicated region
    $region2: #{tpu_custom_call.1} parent=1 // pred_check
      _
    $region3: #{tpu_custom_call.1} parent=1 // pred_check_branch
      %14 = sbr.rel (0) target = $region5
    $region4: #{tpu_custom_call.1} parent=1 // pred_region
      %s16 = ssub.s32 4096, 4096
      %17 = vsyncadd [#allocation3], %s16
      %s18 = sshll.u32 [#allocation2], 4
      %s19 = int_to_ptr.vmem [resolvable:$true] %s18
      %24 = dma.hbm_to_vmem [thread:$0]  %s0, 4096, %s19, [#allocation3], 1024, 1024, 64
    $region5: #{tpu_custom_call.1} parent=1 // pred_fallthru
      _
    // Predicated region
    $region6: #{tpu_custom_call.1} parent=1 // pred_check
      _
    $region7: #{tpu_custom_call.1} parent=1 // pred_check_branch
      %26 = sbr.rel (0) target = $region9
    $region8: #{tpu_custom_call.1} parent=1 // pred_region
      %s28 = ssub.s32 4096, 4096
      %29 = vsyncadd [#allocation6], %s28
      %s30 = sshll.u32 [#allocation5], 4
      %s31 = int_to_ptr.vmem [resolvable:$true] %s30
      %36 = dma.hbm_to_vmem [thread:$0]  %s1, 4096, %s31, [#allocation6], 1024, 1024, 64
    $region9: #{tpu_custom_call.1} parent=1 // pred_fallthru
      _
    // Predicated region
    $region10: #{tpu_custom_call.1} parent=1 // pred_check
      _
    $region11: #{tpu_custom_call.1} parent=1 // pred_check_branch
      %38 = sbr.rel (0) target = $region13
    $region12: #{tpu_custom_call.1} parent=1 // pred_region
      %39 = dma.done [#allocation3], 4096
    $region13: #{tpu_custom_call.1} parent=1 // pred_fallthru
      _
    // Predicated region
    $region14: #{tpu_custom_call.1} parent=1 // pred_check
      _
    $region15: #{tpu_custom_call.1} parent=1 // pred_check_branch
      %41 = sbr.rel (0) target = $region17
    $region16: #{tpu_custom_call.1} parent=1 // pred_region
      %42 = dma.done [#allocation6], 4096
    $region17: #{tpu_custom_call.1} parent=1 // pred_fallthru
      _
    %v43 = vld [vmem:[#allocation2] sm:$0xff]
    %v44 = vld [vmem:[#allocation2 + $0x8] sm:$0xff]
    %v45 = vld [vmem:[#allocation2 + $0x10] sm:$0xff]
    %v46 = vld [vmem:[#allocation2 + $0x18] sm:$0xff]
    %v47 = vld [vmem:[#allocation2 + $0x20] sm:$0xff]
    %v48 = vld [vmem:[#allocation2 + $0x28] sm:$0xff]
    %v49 = vld [vmem:[#allocation2 + $0x30] sm:$0xff]
    %v50 = vld [vmem:[#allocation2 + $0x38] sm:$0xff]
    %v51 = vld [vmem:[#allocation2 + $0x40] sm:$0xff]
    %v52 = vld [vmem:[#allocation2 + $0x48] sm:$0xff]
    %v53 = vld [vmem:[#allocation2 + $0x50] sm:$0xff]
    %v54 = vld [vmem:[#allocation2 + $0x58] sm:$0xff]
    %v55 = vld [vmem:[#allocation2 + $0x60] sm:$0xff]
    %v56 = vld [vmem:[#allocation2 + $0x68] sm:$0xff]
    %v57 = vld [vmem:[#allocation2 + $0x70] sm:$0xff]
    %v58 = vld [vmem:[#allocation2 + $0x78] sm:$0xff]
    %v59 = vld [vmem:[#allocation2 + $0x80] sm:$0xff]
    %v60 = vld [vmem:[#allocation2 + $0x88] sm:$0xff]
    %v61 = vld [vmem:[#allocation2 + $0x90] sm:$0xff]
    %v62 = vld [vmem:[#allocation2 + $0x98] sm:$0xff]
    %v63 = vld [vmem:[#allocation2 + $0xa0] sm:$0xff]
    %v64 = vld [vmem:[#allocation2 + $0xa8] sm:$0xff]
    %v65 = vld [vmem:[#allocation2 + $0xb0] sm:$0xff]
    %v66 = vld [vmem:[#allocation2 + $0xb8] sm:$0xff]
    %v67 = vld [vmem:[#allocation2 + $0xc0] sm:$0xff]
    %v68 = vld [vmem:[#allocation2 + $0xc8] sm:$0xff]
    %v69 = vld [vmem:[#allocation2 + $0xd0] sm:$0xff]
    %v70 = vld [vmem:[#allocation2 + $0xd8] sm:$0xff]
    %v71 = vld [vmem:[#allocation2 + $0xe0] sm:$0xff]
    %v72 = vld [vmem:[#allocation2 + $0xe8] sm:$0xff]
    %v73 = vld [vmem:[#allocation2 + $0xf0] sm:$0xff]
    %v74 = vld [vmem:[#allocation2 + $0xf8] sm:$0xff]
    %v75 = vld [vmem:[#allocation5] sm:$0xff]
    %v76 = vld [vmem:[#allocation5 + $0x8] sm:$0xff]
    %v77 = vld [vmem:[#allocation5 + $0x10] sm:$0xff]
    %v78 = vld [vmem:[#allocation5 + $0x18] sm:$0xff]
    %v79 = vld [vmem:[#allocation5 + $0x20] sm:$0xff]
    %v80 = vld [vmem:[#allocation5 + $0x28] sm:$0xff]
    %v81 = vld [vmem:[#allocation5 + $0x30] sm:$0xff]
    %v82 = vld [vmem:[#allocation5 + $0x38] sm:$0xff]
    %v83 = vld [vmem:[#allocation5 + $0x40] sm:$0xff]
    %v84 = vld [vmem:[#allocation5 + $0x48] sm:$0xff]
    %v85 = vld [vmem:[#allocation5 + $0x50] sm:$0xff]
    %v86 = vld [vmem:[#allocation5 + $0x58] sm:$0xff]
    %v87 = vld [vmem:[#allocation5 + $0x60] sm:$0xff]
    %v88 = vld [vmem:[#allocation5 + $0x68] sm:$0xff]
    %v89 = vld [vmem:[#allocation5 + $0x70] sm:$0xff]
    %v90 = vld [vmem:[#allocation5 + $0x78] sm:$0xff]
    %v91 = vld [vmem:[#allocation5 + $0x80] sm:$0xff]
    %v92 = vld [vmem:[#allocation5 + $0x88] sm:$0xff]
    %v93 = vld [vmem:[#allocation5 + $0x90] sm:$0xff]
    %v94 = vld [vmem:[#allocation5 + $0x98] sm:$0xff]
    %v95 = vld [vmem:[#allocation5 + $0xa0] sm:$0xff]
    %v96 = vld [vmem:[#allocation5 + $0xa8] sm:$0xff]
    %v97 = vld [vmem:[#allocation5 + $0xb0] sm:$0xff]
    %v98 = vld [vmem:[#allocation5 + $0xb8] sm:$0xff]
    %v99 = vld [vmem:[#allocation5 + $0xc0] sm:$0xff]
    %v100 = vld [vmem:[#allocation5 + $0xc8] sm:$0xff]
    %v101 = vld [vmem:[#allocation5 + $0xd0] sm:$0xff]
    %v102 = vld [vmem:[#allocation5 + $0xd8] sm:$0xff]
    %v103 = vld [vmem:[#allocation5 + $0xe0] sm:$0xff]
    %v104 = vld [vmem:[#allocation5 + $0xe8] sm:$0xff]
    %v105 = vld [vmem:[#allocation5 + $0xf0] sm:$0xff]
    %v106 = vld [vmem:[#allocation5 + $0xf8] sm:$0xff]
    %v107 = vxor.u32 %v43, 2147483648
    %v108 = vxor.u32 %v44, 2147483648
    %v109 = vxor.u32 %v45, 2147483648
    %v110 = vxor.u32 %v46, 2147483648
    %v111 = vxor.u32 %v47, 2147483648
    %v112 = vxor.u32 %v48, 2147483648
    %v113 = vxor.u32 %v49, 2147483648
    %v114 = vxor.u32 %v50, 2147483648
    %v115 = vxor.u32 %v51, 2147483648
    %v116 = vxor.u32 %v52, 2147483648
    %v117 = vxor.u32 %v53, 2147483648
    %v118 = vxor.u32 %v54, 2147483648
    %v119 = vxor.u32 %v55, 2147483648
    %v120 = vxor.u32 %v56, 2147483648
    %v121 = vxor.u32 %v57, 2147483648
    %v122 = vxor.u32 %v58, 2147483648
    %v123 = vxor.u32 %v59, 2147483648
    %v124 = vxor.u32 %v60, 2147483648
    %v125 = vxor.u32 %v61, 2147483648
    %v126 = vxor.u32 %v62, 2147483648
    %v127 = vxor.u32 %v63, 2147483648
    %v128 = vxor.u32 %v64, 2147483648
    %v129 = vxor.u32 %v65, 2147483648
    %v130 = vxor.u32 %v66, 2147483648
    %v131 = vxor.u32 %v67, 2147483648
    %v132 = vxor.u32 %v68, 2147483648
    %v133 = vxor.u32 %v69, 2147483648
    %v134 = vxor.u32 %v70, 2147483648
    %v135 = vxor.u32 %v71, 2147483648
    %v136 = vxor.u32 %v72, 2147483648
    %v137 = vxor.u32 %v73, 2147483648
    %v138 = vxor.u32 %v74, 2147483648
    %v139 = vmul.f32 %v107, 1.442695
    %v140 = vpow.pop %v139
    %v141 = vmul.f32 %v108, 1.442695
    %v142 = vpow.pop %v141
    %v143 = vmul.f32 %v109, 1.442695
    %v144 = vpow.pop %v143
    %v145 = vmul.f32 %v110, 1.442695
    %v146 = vpow.pop %v145
    %v147 = vmul.f32 %v111, 1.442695
    %v148 = vpow.pop %v147
    %v149 = vmul.f32 %v112, 1.442695
    %v150 = vpow.pop %v149
    %v151 = vmul.f32 %v113, 1.442695
    %v152 = vpow.pop %v151
    %v153 = vmul.f32 %v114, 1.442695
    %v154 = vpow.pop %v153
    %v155 = vmul.f32 %v115, 1.442695
    %v156 = vpow.pop %v155
    %v157 = vmul.f32 %v116, 1.442695
    %v158 = vpow.pop %v157
    %v159 = vmul.f32 %v117, 1.442695
    %v160 = vpow.pop %v159
    %v161 = vmul.f32 %v118, 1.442695
    %v162 = vpow.pop %v161
    %v163 = vmul.f32 %v119, 1.442695
    %v164 = vpow.pop %v163
    %v165 = vmul.f32 %v120, 1.442695
    %v166 = vpow.pop %v165
    %v167 = vmul.f32 %v121, 1.442695
    %v168 = vpow.pop %v167
    %v169 = vmul.f32 %v122, 1.442695
    %v170 = vpow.pop %v169
    %v171 = vmul.f32 %v123, 1.442695
    %v172 = vpow.pop %v171
    %v173 = vmul.f32 %v124, 1.442695
    %v174 = vpow.pop %v173
    %v175 = vmul.f32 %v125, 1.442695
    %v176 = vpow.pop %v175
    %v177 = vmul.f32 %v126, 1.442695
    %v178 = vpow.pop %v177
    %v179 = vmul.f32 %v127, 1.442695
    %v180 = vpow.pop %v179
    %v181 = vmul.f32 %v128, 1.442695
    %v182 = vpow.pop %v181
    %v183 = vmul.f32 %v129, 1.442695
    %v184 = vpow.pop %v183
    %v185 = vmul.f32 %v130, 1.442695
    %v186 = vpow.pop %v185
    %v187 = vmul.f32 %v131, 1.442695
    %v188 = vpow.pop %v187
    %v189 = vmul.f32 %v132, 1.442695
    %v190 = vpow.pop %v189
    %v191 = vmul.f32 %v133, 1.442695
    %v192 = vpow.pop %v191
    %v193 = vmul.f32 %v134, 1.442695
    %v194 = vpow.pop %v193
    %v195 = vmul.f32 %v135, 1.442695
    %v196 = vpow.pop %v195
    %v197 = vmul.f32 %v136, 1.442695
    %v198 = vpow.pop %v197
    %v199 = vmul.f32 %v137, 1.442695
    %v200 = vpow.pop %v199
    %v201 = vmul.f32 %v138, 1.442695
    %v202 = vpow.pop %v201
    %v203 = vadd.f32 %v140, 1.0
    %v204 = vadd.f32 %v142, 1.0
    %v205 = vadd.f32 %v144, 1.0
    %v206 = vadd.f32 %v146, 1.0
    %v207 = vadd.f32 %v148, 1.0
    %v208 = vadd.f32 %v150, 1.0
    %v209 = vadd.f32 %v152, 1.0
    %v210 = vadd.f32 %v154, 1.0
    %v211 = vadd.f32 %v156, 1.0
    %v212 = vadd.f32 %v158, 1.0
    %v213 = vadd.f32 %v160, 1.0
    %v214 = vadd.f32 %v162, 1.0
    %v215 = vadd.f32 %v164, 1.0
    %v216 = vadd.f32 %v166, 1.0
    %v217 = vadd.f32 %v168, 1.0
    %v218 = vadd.f32 %v170, 1.0
    %v219 = vadd.f32 %v172, 1.0
    %v220 = vadd.f32 %v174, 1.0
    %v221 = vadd.f32 %v176, 1.0
    %v222 = vadd.f32 %v178, 1.0
    %v223 = vadd.f32 %v180, 1.0
    %v224 = vadd.f32 %v182, 1.0
    %v225 = vadd.f32 %v184, 1.0
    %v226 = vadd.f32 %v186, 1.0
    %v227 = vadd.f32 %v188, 1.0
    %v228 = vadd.f32 %v190, 1.0
    %v229 = vadd.f32 %v192, 1.0
    %v230 = vadd.f32 %v194, 1.0
    %v231 = vadd.f32 %v196, 1.0
    %v232 = vadd.f32 %v198, 1.0
    %v233 = vadd.f32 %v200, 1.0
    %v234 = vadd.f32 %v202, 1.0
    %v235 = vrcp.pop %v203
    %v236 = vmul.f32 1.0, %v235
    %v237 = vrcp.pop %v204
    %v238 = vmul.f32 1.0, %v237
    %v239 = vrcp.pop %v205
    %v240 = vmul.f32 1.0, %v239
    %v241 = vrcp.pop %v206
    %v242 = vmul.f32 1.0, %v241
    %v243 = vrcp.pop %v207
    %v244 = vmul.f32 1.0, %v243
    %v245 = vrcp.pop %v208
    %v246 = vmul.f32 1.0, %v245
    %v247 = vrcp.pop %v209
    %v248 = vmul.f32 1.0, %v247
    %v249 = vrcp.pop %v210
    %v250 = vmul.f32 1.0, %v249
    %v251 = vrcp.pop %v211
    %v252 = vmul.f32 1.0, %v251
    %v253 = vrcp.pop %v212
    %v254 = vmul.f32 1.0, %v253
    %v255 = vrcp.pop %v213
    %v256 = vmul.f32 1.0, %v255
    %v257 = vrcp.pop %v214
    %v258 = vmul.f32 1.0, %v257
    %v259 = vrcp.pop %v215
    %v260 = vmul.f32 1.0, %v259
    %v261 = vrcp.pop %v216
    %v262 = vmul.f32 1.0, %v261
    %v263 = vrcp.pop %v217
    %v264 = vmul.f32 1.0, %v263
    %v265 = vrcp.pop %v218
    %v266 = vmul.f32 1.0, %v265
    %v267 = vrcp.pop %v219
    %v268 = vmul.f32 1.0, %v267
    %v269 = vrcp.pop %v220
    %v270 = vmul.f32 1.0, %v269
    %v271 = vrcp.pop %v221
    %v272 = vmul.f32 1.0, %v271
    %v273 = vrcp.pop %v222
    %v274 = vmul.f32 1.0, %v273
    %v275 = vrcp.pop %v223
    %v276 = vmul.f32 1.0, %v275
    %v277 = vrcp.pop %v224
    %v278 = vmul.f32 1.0, %v277
    %v279 = vrcp.pop %v225
    %v280 = vmul.f32 1.0, %v279
    %v281 = vrcp.pop %v226
    %v282 = vmul.f32 1.0, %v281
    %v283 = vrcp.pop %v227
    %v284 = vmul.f32 1.0, %v283
    %v285 = vrcp.pop %v228
    %v286 = vmul.f32 1.0, %v285
    %v287 = vrcp.pop %v229
    %v288 = vmul.f32 1.0, %v287
    %v289 = vrcp.pop %v230
    %v290 = vmul.f32 1.0, %v289
    %v291 = vrcp.pop %v231
    %v292 = vmul.f32 1.0, %v291
    %v293 = vrcp.pop %v232
    %v294 = vmul.f32 1.0, %v293
    %v295 = vrcp.pop %v233
    %v296 = vmul.f32 1.0, %v295
    %v297 = vrcp.pop %v234
    %v298 = vmul.f32 1.0, %v297
    %v299 = vmul.f32 %v236, %v75
    %v300 = vmul.f32 %v238, %v76
    %v301 = vmul.f32 %v240, %v77
    %v302 = vmul.f32 %v242, %v78
    %v303 = vmul.f32 %v244, %v79
    %v304 = vmul.f32 %v246, %v80
    %v305 = vmul.f32 %v248, %v81
    %v306 = vmul.f32 %v250, %v82
    %v307 = vmul.f32 %v252, %v83
    %v308 = vmul.f32 %v254, %v84
    %v309 = vmul.f32 %v256, %v85
    %v310 = vmul.f32 %v258, %v86
    %v311 = vmul.f32 %v260, %v87
    %v312 = vmul.f32 %v262, %v88
    %v313 = vmul.f32 %v264, %v89
    %v314 = vmul.f32 %v266, %v90
    %v315 = vmul.f32 %v268, %v91
    %v316 = vmul.f32 %v270, %v92
    %v317 = vmul.f32 %v272, %v93
    %v318 = vmul.f32 %v274, %v94
    %v319 = vmul.f32 %v276, %v95
    %v320 = vmul.f32 %v278, %v96
    %v321 = vmul.f32 %v280, %v97
    %v322 = vmul.f32 %v282, %v98
    %v323 = vmul.f32 %v284, %v99
    %v324 = vmul.f32 %v286, %v100
    %v325 = vmul.f32 %v288, %v101
    %v326 = vmul.f32 %v290, %v102
    %v327 = vmul.f32 %v292, %v103
    %v328 = vmul.f32 %v294, %v104
    %v329 = vmul.f32 %v296, %v105
    %v330 = vmul.f32 %v298, %v106
    %v331 = vadd.f32 %v236, %v75
    %v332 = vadd.f32 %v238, %v76
    %v333 = vadd.f32 %v240, %v77
    %v334 = vadd.f32 %v242, %v78
    %v335 = vadd.f32 %v244, %v79
    %v336 = vadd.f32 %v246, %v80
    %v337 = vadd.f32 %v248, %v81
    %v338 = vadd.f32 %v250, %v82
    %v339 = vadd.f32 %v252, %v83
    %v340 = vadd.f32 %v254, %v84
    %v341 = vadd.f32 %v256, %v85
    %v342 = vadd.f32 %v258, %v86
    %v343 = vadd.f32 %v260, %v87
    %v344 = vadd.f32 %v262, %v88
    %v345 = vadd.f32 %v264, %v89
    %v346 = vadd.f32 %v266, %v90
    %v347 = vadd.f32 %v268, %v91
    %v348 = vadd.f32 %v270, %v92
    %v349 = vadd.f32 %v272, %v93
    %v350 = vadd.f32 %v274, %v94
    %v351 = vadd.f32 %v276, %v95
    %v352 = vadd.f32 %v278, %v96
    %v353 = vadd.f32 %v280, %v97
    %v354 = vadd.f32 %v282, %v98
    %v355 = vadd.f32 %v284, %v99
    %v356 = vadd.f32 %v286, %v100
    %v357 = vadd.f32 %v288, %v101
    %v358 = vadd.f32 %v290, %v102
    %v359 = vadd.f32 %v292, %v103
    %v360 = vadd.f32 %v294, %v104
    %v361 = vadd.f32 %v296, %v105
    %v362 = vadd.f32 %v298, %v106
    %v363 = vadd.f32 %v299, %v307
    %v364 = vadd.f32 %v363, %v315
    %v365 = vadd.f32 %v364, %v323
    %v366 = vadd.f32 %v300, %v308
    %v367 = vadd.f32 %v366, %v316
    %v368 = vadd.f32 %v367, %v324
    %v369 = vadd.f32 %v301, %v309
    %v370 = vadd.f32 %v369, %v317
    %v371 = vadd.f32 %v370, %v325
    %v372 = vadd.f32 %v302, %v310
    %v373 = vadd.f32 %v372, %v318
    %v374 = vadd.f32 %v373, %v326
    %v375 = vadd.f32 %v303, %v311
    %v376 = vadd.f32 %v375, %v319
    %v377 = vadd.f32 %v376, %v327
    %v378 = vadd.f32 %v304, %v312
    %v379 = vadd.f32 %v378, %v320
    %v380 = vadd.f32 %v379, %v328
    %v381 = vadd.f32 %v305, %v313
    %v382 = vadd.f32 %v381, %v321
    %v383 = vadd.f32 %v382, %v329
    %v384 = vadd.f32 %v306, %v314
    %v385 = vadd.f32 %v384, %v322
    %v386 = vadd.f32 %v385, %v330
    %387 = vst [vmem:[#allocation7] sm:$0xff] %v365
    %388 = vst [vmem:[#allocation7 + $0x8] sm:$0xff] %v368
    %389 = vst [vmem:[#allocation7 + $0x10] sm:$0xff] %v371
    %390 = vst [vmem:[#allocation7 + $0x18] sm:$0xff] %v374
    %391 = vst [vmem:[#allocation7 + $0x20] sm:$0xff] %v377
    %392 = vst [vmem:[#allocation7 + $0x28] sm:$0xff] %v380
    %393 = vst [vmem:[#allocation7 + $0x30] sm:$0xff] %v383
    %394 = vst [vmem:[#allocation7 + $0x38] sm:$0xff] %v386
    %v395 = vadd.f32 %v331, %v339
    %v396 = vadd.f32 %v395, %v347
    %v397 = vadd.f32 %v396, %v355
    %v398 = vadd.f32 %v332, %v340
    %v399 = vadd.f32 %v398, %v348
    %v400 = vadd.f32 %v399, %v356
    %v401 = vadd.f32 %v333, %v341
    %v402 = vadd.f32 %v401, %v349
    %v403 = vadd.f32 %v402, %v357
    %v404 = vadd.f32 %v334, %v342
    %v405 = vadd.f32 %v404, %v350
    %v406 = vadd.f32 %v405, %v358
    %v407 = vadd.f32 %v335, %v343
    %v408 = vadd.f32 %v407, %v351
    %v409 = vadd.f32 %v408, %v359
    %v410 = vadd.f32 %v336, %v344
    %v411 = vadd.f32 %v410, %v352
    %v412 = vadd.f32 %v411, %v360
    %v413 = vadd.f32 %v337, %v345
    %v414 = vadd.f32 %v413, %v353
    %v415 = vadd.f32 %v414, %v361
    %v416 = vadd.f32 %v338, %v346
    %v417 = vadd.f32 %v416, %v354
    %v418 = vadd.f32 %v417, %v362
    %419 = vst [vmem:[#allocation8] sm:$0xff] %v397
    %420 = vst [vmem:[#allocation8 + $0x8] sm:$0xff] %v400
    %421 = vst [vmem:[#allocation8 + $0x10] sm:$0xff] %v403
    %422 = vst [vmem:[#allocation8 + $0x18] sm:$0xff] %v406
    %423 = vst [vmem:[#allocation8 + $0x20] sm:$0xff] %v409
    %424 = vst [vmem:[#allocation8 + $0x28] sm:$0xff] %v412
    %425 = vst [vmem:[#allocation8 + $0x30] sm:$0xff] %v415
    %426 = vst [vmem:[#allocation8 + $0x38] sm:$0xff] %v418
    %p427 = scmp.eq.s32.totalorder 0, 0
    // Predicated region
    $region18: #{tpu_custom_call.1} parent=1 // pred_check
      %p428 = pneg %p427
    $region19: #{tpu_custom_call.1} parent=1 // pred_check_branch
      %430 = sbr.rel (%p428) target = $region21
    $region20: #{tpu_custom_call.1} parent=1 // pred_region
      %v431 = vlaneseq
      %v432 = vshrl.u32 %v431, 7
      %v433 = vadd.s32 %v432, 8
      %v434 = vadd.s32 %v432, 16
      %v435 = vadd.s32 %v432, 24
      %vm436 = vcmp.lt.s32.totalorder %v432, 2
      %vm437 = vcmp.lt.s32.totalorder %v433, 2
      %vm438 = vcmp.lt.s32.totalorder %v434, 2
      %vm439 = vcmp.lt.s32.totalorder %v435, 2
      %v440 = vsel %vm436, %v299, 0.0
      %v441 = vsel %vm436, %v300, 0.0
      %v442 = vsel %vm436, %v301, 0.0
      %v443 = vsel %vm436, %v302, 0.0
      %v444 = vsel %vm436, %v303, 0.0
      %v445 = vsel %vm436, %v304, 0.0
      %v446 = vsel %vm436, %v305, 0.0
      %v447 = vsel %vm436, %v306, 0.0
      %v448 = vsel %vm437, %v307, 0.0
      %v449 = vsel %vm437, %v308, 0.0
      %v450 = vsel %vm437, %v309, 0.0
      %v451 = vsel %vm437, %v310, 0.0
      %v452 = vsel %vm437, %v311, 0.0
      %v453 = vsel %vm437, %v312, 0.0
      %v454 = vsel %vm437, %v313, 0.0
      %v455 = vsel %vm437, %v314, 0.0
      %v456 = vsel %vm438, %v315, 0.0
      %v457 = vsel %vm438, %v316, 0.0
      %v458 = vsel %vm438, %v317, 0.0
      %v459 = vsel %vm438, %v318, 0.0
      %v460 = vsel %vm438, %v319, 0.0
      %v461 = vsel %vm438, %v320, 0.0
      %v462 = vsel %vm438, %v321, 0.0
      %v463 = vsel %vm438, %v322, 0.0
      %v464 = vsel %vm439, %v323, 0.0
      %v465 = vsel %vm439, %v324, 0.0
      %v466 = vsel %vm439, %v325, 0.0
      %v467 = vsel %vm439, %v326, 0.0
      %v468 = vsel %vm439, %v327, 0.0
      %v469 = vsel %vm439, %v328, 0.0
      %v470 = vsel %vm439, %v329, 0.0
      %v471 = vsel %vm439, %v330, 0.0
      %v472 = vadd.f32 %v440, %v448
      %v473 = vadd.f32 %v472, %v456
      %v474 = vadd.f32 %v473, %v464
      %v475 = vadd.f32 %v441, %v449
      %v476 = vadd.f32 %v475, %v457
      %v477 = vadd.f32 %v476, %v465
      %v478 = vadd.f32 %v442, %v450
      %v479 = vadd.f32 %v478, %v458
      %v480 = vadd.f32 %v479, %v466
      %v481 = vadd.f32 %v443, %v451
      %v482 = vadd.f32 %v481, %v459
      %v483 = vadd.f32 %v482, %v467
      %v484 = vadd.f32 %v444, %v452
      %v485 = vadd.f32 %v484, %v460
      %v486 = vadd.f32 %v485, %v468
      %v487 = vadd.f32 %v445, %v453
      %v488 = vadd.f32 %v487, %v461
      %v489 = vadd.f32 %v488, %v469
      %v490 = vadd.f32 %v446, %v454
      %v491 = vadd.f32 %v490, %v462
      %v492 = vadd.f32 %v491, %v470
      %v493 = vadd.f32 %v447, %v455
      %v494 = vadd.f32 %v493, %v463
      %v495 = vadd.f32 %v494, %v471
      %496 = vst [vmem:[#allocation7] sm:$0xff] %v474
      %497 = vst [vmem:[#allocation7 + $0x8] sm:$0xff] %v477
      %498 = vst [vmem:[#allocation7 + $0x10] sm:$0xff] %v480
      %499 = vst [vmem:[#allocation7 + $0x18] sm:$0xff] %v483
      %500 = vst [vmem:[#allocation7 + $0x20] sm:$0xff] %v486
      %501 = vst [vmem:[#allocation7 + $0x28] sm:$0xff] %v489
      %502 = vst [vmem:[#allocation7 + $0x30] sm:$0xff] %v492
      %503 = vst [vmem:[#allocation7 + $0x38] sm:$0xff] %v495
      %v504 = vsel %vm436, %v331, 0.0
      %v505 = vsel %vm436, %v332, 0.0
      %v506 = vsel %vm436, %v333, 0.0
      %v507 = vsel %vm436, %v334, 0.0
      %v508 = vsel %vm436, %v335, 0.0
      %v509 = vsel %vm436, %v336, 0.0
      %v510 = vsel %vm436, %v337, 0.0
      %v511 = vsel %vm436, %v338, 0.0
      %v512 = vsel %vm437, %v339, 0.0
      %v513 = vsel %vm437, %v340, 0.0
      %v514 = vsel %vm437, %v341, 0.0
      %v515 = vsel %vm437, %v342, 0.0
      %v516 = vsel %vm437, %v343, 0.0
      %v517 = vsel %vm437, %v344, 0.0
      %v518 = vsel %vm437, %v345, 0.0
      %v519 = vsel %vm437, %v346, 0.0
      %v520 = vsel %vm438, %v347, 0.0
      %v521 = vsel %vm438, %v348, 0.0
      %v522 = vsel %vm438, %v349, 0.0
      %v523 = vsel %vm438, %v350, 0.0
      %v524 = vsel %vm438, %v351, 0.0
      %v525 = vsel %vm438, %v352, 0.0
      %v526 = vsel %vm438, %v353, 0.0
      %v527 = vsel %vm438, %v354, 0.0
      %v528 = vsel %vm439, %v355, 0.0
      %v529 = vsel %vm439, %v356, 0.0
      %v530 = vsel %vm439, %v357, 0.0
      %v531 = vsel %vm439, %v358, 0.0
      %v532 = vsel %vm439, %v359, 0.0
      %v533 = vsel %vm439, %v360, 0.0
      %v534 = vsel %vm439, %v361, 0.0
      %v535 = vsel %vm439, %v362, 0.0
      %v536 = vadd.f32 %v504, %v512
      %v537 = vadd.f32 %v536, %v520
      %v538 = vadd.f32 %v537, %v528
      %v539 = vadd.f32 %v505, %v513
      %v540 = vadd.f32 %v539, %v521
      %v541 = vadd.f32 %v540, %v529
      %v542 = vadd.f32 %v506, %v514
      %v543 = vadd.f32 %v542, %v522
      %v544 = vadd.f32 %v543, %v530
      %v545 = vadd.f32 %v507, %v515
      %v546 = vadd.f32 %v545, %v523
      %v547 = vadd.f32 %v546, %v531
      %v548 = vadd.f32 %v508, %v516
      %v549 = vadd.f32 %v548, %v524
      %v550 = vadd.f32 %v549, %v532
      %v551 = vadd.f32 %v509, %v517
      %v552 = vadd.f32 %v551, %v525
      %v553 = vadd.f32 %v552, %v533
      %v554 = vadd.f32 %v510, %v518
      %v555 = vadd.f32 %v554, %v526
      %v556 = vadd.f32 %v555, %v534
      %v557 = vadd.f32 %v511, %v519
      %v558 = vadd.f32 %v557, %v527
      %v559 = vadd.f32 %v558, %v535
      %560 = vst [vmem:[#allocation8] sm:$0xff] %v538
      %561 = vst [vmem:[#allocation8 + $0x8] sm:$0xff] %v541
      %562 = vst [vmem:[#allocation8 + $0x10] sm:$0xff] %v544
      %563 = vst [vmem:[#allocation8 + $0x18] sm:$0xff] %v547
      %564 = vst [vmem:[#allocation8 + $0x20] sm:$0xff] %v550
      %565 = vst [vmem:[#allocation8 + $0x28] sm:$0xff] %v553
      %566 = vst [vmem:[#allocation8 + $0x30] sm:$0xff] %v556
      %567 = vst [vmem:[#allocation8 + $0x38] sm:$0xff] %v559
    $region21: #{tpu_custom_call.1} parent=1 // pred_fallthru
      _
    // Predicated region
    $region22: #{tpu_custom_call.1} parent=1 // pred_check
      _
    $region23: #{tpu_custom_call.1} parent=1 // pred_check_branch
      %569 = sbr.rel (0) target = $region25
    $region24: #{tpu_custom_call.1} parent=1 // pred_region
      %s571 = ssub.s32 1024, 1024
      %572 = vsyncadd [#allocation4], %s571
      %s574 = sshll.u32 [#allocation7], 4
      %s575 = int_to_ptr.vmem [resolvable:$true] %s574
      %577 = dma.vmem_to_hbm [thread:$0]  %s575, 1024, %s2, [#allocation4]
    $region25: #{tpu_custom_call.1} parent=1 // pred_fallthru
      _
    // Predicated region
    $region26: #{tpu_custom_call.1} parent=1 // pred_check
      _
    $region27: #{tpu_custom_call.1} parent=1 // pred_check_branch
      %579 = sbr.rel (0) target = $region29
    $region28: #{tpu_custom_call.1} parent=1 // pred_region
      %s581 = ssub.s32 1024, 1024
      %582 = vsyncadd [#allocation9], %s581
      %s584 = sshll.u32 [#allocation8], 4
      %s585 = int_to_ptr.vmem [resolvable:$true] %s584
      %587 = dma.vmem_to_hbm [thread:$0]  %s585, 1024, %s3, [#allocation9]
    $region29: #{tpu_custom_call.1} parent=1 // pred_fallthru
      _
    // Predicated region
    $region30: #{tpu_custom_call.1} parent=1 // pred_check
      _
    $region31: #{tpu_custom_call.1} parent=1 // pred_check_branch
      %589 = sbr.rel (0) target = $region33
    $region32: #{tpu_custom_call.1} parent=1 // pred_region
      %590 = dma.done [#allocation4], 1024
    $region33: #{tpu_custom_call.1} parent=1 // pred_fallthru
      _
    // Predicated region
    $region34: #{tpu_custom_call.1} parent=1 // pred_check
      _
    $region35: #{tpu_custom_call.1} parent=1 // pred_check_branch
      %592 = sbr.rel (0) target = $region37
    $region36: #{tpu_custom_call.1} parent=1 // pred_region
      %593 = dma.done [#allocation9], 1024
    $region37: #{tpu_custom_call.1} parent=1 // pred_fallthru
      _
    %594 = vsyncpa [#allocation3], 1
    %595 = vsyncpa [#allocation6], 1
    %596 = vsyncpa [#allocation4], 1
    %597 = vsyncpa [#allocation9], 1

</llo_original>
